<compile_context>
chip_gen: v6e
topology: v6e:2x2x1
jax: 0.10.0
libtpu: 0.0.40
codegen_flags: <defaults>
</compile_context>

<pallas_src>
import jax
import jax.numpy as jnp
from jax.experimental import pallas as pl
from jax.experimental.pallas import tpu as pltpu


# ---------------------------------------------------------------------------
# Kernel bodies
# ---------------------------------------------------------------------------
def _pool_math(x, w, bias, mask):
    """x: (TB, S, H) f32, w: (1, H) f32, bias: scalar f32, mask: (TB, S) or None."""
    # Linear projection to a scalar score per token (lane reduce over H).
    scores = jnp.sum(x * w[None, :, :], axis=-1) + bias            # (TB, S)
    if mask is not None:
        # Note: scores are computed in f32, so the fill value is f32 min
        # (PyTorch uses min of x.dtype; identical for the f32 demo below).
        scores = jnp.where(mask == 0, jnp.finfo(jnp.float32).min, scores)
    # Numerically-stable softmax along the sequence (lane) axis.
    scores = scores - jnp.max(scores, axis=-1, keepdims=True)
    e = jnp.exp(scores)
    p = e / jnp.sum(e, axis=-1, keepdims=True)                     # (TB, S)
    # Weighted sum over the sequence axis.
    return jnp.sum(p[..., None] * x, axis=1)                       # (TB, H)


def _attn_pool_kernel(x_ref, w_ref, b_ref, o_ref):
    x = x_ref[...].astype(jnp.float32)
    w = w_ref[...].astype(jnp.float32)
    out = _pool_math(x, w, b_ref[0], None)
    o_ref[...] = out.astype(o_ref.dtype)


def _attn_pool_mask_kernel(x_ref, w_ref, b_ref, m_ref, o_ref):
    x = x_ref[...].astype(jnp.float32)
    w = w_ref[...].astype(jnp.float32)
    out = _pool_math(x, w, b_ref[0], m_ref[...])
    o_ref[...] = out.astype(o_ref.dtype)


# ---------------------------------------------------------------------------
# Wrapper
# ---------------------------------------------------------------------------
def attention_pooling_forward(x, weight, bias, mask=None):
    """x: (B, S, H); weight: (1, H); bias: (1,); mask: (B, S) or None -> (B, H)."""
    B, S, H = x.shape
    assert weight.shape == (1, H), "weight must be (1, hidden_dim)"

    # Keep the DMA'd weight in x's dtype (halves PE/weight traffic for bf16);
    # the kernel still accumulates in f32.
    weight = weight.astype(x.dtype)
    bias32 = bias.astype(jnp.float32).reshape((1,))

    # Batch tile: amortizes the ~0.35 us per-grid-step overhead and keeps the
    # sublane dim of the mask / output blocks a multiple of 8 when tiled.
    if B <= 8:
        TB = B
    else:
        TB = 8
    Bp = -(-B // TB) * TB
    if Bp != B:
        x = jnp.pad(x, ((0, Bp - B), (0, 0), (0, 0)))
        if mask is not None:
            mask = jnp.pad(mask, ((0, Bp - B), (0, 0)), constant_values=1)

    grid = (Bp // TB,)
    x_spec = pl.BlockSpec((TB, S, H), lambda i: (i, 0, 0))
    w_spec = pl.BlockSpec((1, H), lambda i: (0, 0))      # constant block -> resident
    b_spec = pl.BlockSpec(memory_space=pltpu.MemorySpace.SMEM)
    out_spec = pl.BlockSpec((TB, H), lambda i: (i, 0))
    out_shape = jax.ShapeDtypeStruct((Bp, H), x.dtype)
    cparams = pltpu.CompilerParams(dimension_semantics=("parallel",))

    if mask is None:
        out = pl.pallas_call(
            _attn_pool_kernel,
            out_shape=out_shape,
            grid=grid,
            in_specs=[x_spec, w_spec, b_spec],
            out_specs=out_spec,
            compiler_params=cparams,
        )(x, weight, bias32)
    else:
        m_spec = pl.BlockSpec((TB, S), lambda i: (i, 0))
        out = pl.pallas_call(
            _attn_pool_mask_kernel,
            out_shape=out_shape,
            grid=grid,
            in_specs=[x_spec, w_spec, b_spec, m_spec],
            out_specs=out_spec,
            compiler_params=cparams,
        )(x, weight, bias32, mask.astype(jnp.int32))

    return out[:B]


# ---------------------------------------------------------------------------
# Reference (plain JAX) and main
# ---------------------------------------------------------------------------
def attention_pooling_ref(x, weight, bias, mask=None):
    scores = jnp.einsum("bsh,h->bs", x, weight[0]) + bias[0]
    if mask is not None:
        scores = jnp.where(mask == 0, jnp.finfo(scores.dtype).min, scores)
    p = jax.nn.softmax(scores, axis=-1)
    return jnp.sum(p[..., None] * x, axis=1)


if __name__ == "__main__":
    B, S, H = 2, 8, 32

    key = jax.random.PRNGKey(0)
    kx, kw, kb = jax.random.split(key, 3)
    x = jax.random.normal(kx, (B, S, H), dtype=jnp.float32)
    weight = jax.random.normal(kw, (1, H), dtype=jnp.float32) * 0.1
    bias = jax.random.normal(kb, (1,), dtype=jnp.float32)
    mask = jnp.array(
        [[1, 1, 1, 1, 1, 0, 0, 0],
         [1, 1, 1, 0, 0, 0, 0, 0]], dtype=jnp.int32)

    # No-mask path.
    out = attention_pooling_forward(x, weight, bias)
    out = jax.block_until_ready(out)
    ref = attention_pooling_ref(x, weight, bias)
    assert out.shape == (B, H)
    assert jnp.allclose(out, ref, atol=1e-5, rtol=1e-5), "no-mask mismatch vs reference"

    # Masked path.
    out_m = attention_pooling_forward(x, weight, bias, mask=mask)
    out_m = jax.block_until_ready(out_m)
    ref_m = attention_pooling_ref(x, weight, bias, mask=mask)
    assert out_m.shape == (B, H)
    assert jnp.allclose(out_m, ref_m, atol=1e-5, rtol=1e-5), "masked mismatch vs reference"

    print("KERNEL_OK")
</pallas_src>

<mosaic_0001>
module attributes {stable_mosaic.version = 11 : i64} {
  func.func @_attn_pool_kernel(%arg0: i32, %arg1: memref<2x8x32xf32, #tpu.memory_space<vmem>>, %arg2: memref<1x32xf32, #tpu.memory_space<vmem>>, %arg3: memref<1xf32, #tpu.memory_space<smem>>, %arg4: memref<2x32xf32, #tpu.memory_space<vmem>>) attributes {dimension_semantics = [#tpu.dimension_semantics<parallel>], iteration_bounds = array<i64: 1>, scalar_prefetch = 0 : i64, scratch_operands = 0 : i64, tpu.core_type = #tpu.core_type<tc>, window_params = [{transform_indices = @transform_0, window_bounds = array<i64: 2, 8, 32>}, {pipeline_mode = #tpu.pipeline_mode<synchronous>, transform_indices = @transform_1, window_bounds = array<i64: 1, 32>}, {transform_indices = @transform_2, window_bounds = array<i64: 1>}, {transform_indices = @transform_3, window_bounds = array<i64: 2, 32>}]} {
    %c0 = arith.constant 0 : index
    %c0_0 = arith.constant 0 : index
    %c0_1 = arith.constant 0 : index
    %0 = vector.load %arg1[%c0, %c0_0, %c0_1] : memref<2x8x32xf32, #tpu.memory_space<vmem>>, vector<2x8x32xf32>
    %c0_2 = arith.constant 0 : index
    %c0_3 = arith.constant 0 : index
    %1 = vector.load %arg2[%c0_2, %c0_3] : memref<1x32xf32, #tpu.memory_space<vmem>>, vector<1x32xf32>
    %c0_4 = arith.constant 0 : index
    %2 = memref.load %arg3[%c0_4] : memref<1xf32, #tpu.memory_space<smem>>
    %3 = vector.shape_cast %1 : vector<1x32xf32> to vector<1x1x32xf32>
    %4 = vector.broadcast %3 : vector<1x1x32xf32> to vector<2x8x32xf32>
    %5 = arith.mulf %0, %4 : vector<2x8x32xf32>
    %cst = arith.constant dense<0.000000e+00> : vector<2x8xf32>
    %6 = vector.multi_reduction <add>, %5, %cst [2] : vector<2x8x32xf32> to vector<2x8xf32>
    %7 = vector.broadcast %2 : f32 to vector<2x8xf32>
    %8 = arith.addf %6, %7 : vector<2x8xf32>
    %cst_5 = arith.constant dense<0xFF800000> : vector<2xf32>
    %9 = vector.multi_reduction <maximumf>, %8, %cst_5 [1] : vector<2x8xf32> to vector<2xf32>
    %10 = vector.shape_cast %9 : vector<2xf32> to vector<2x1xf32>
    %11 = vector.broadcast %10 : vector<2x1xf32> to vector<2x8xf32>
    %12 = arith.subf %8, %11 : vector<2x8xf32>
    %13 = math.exp %12 : vector<2x8xf32>
    %cst_6 = arith.constant dense<0.000000e+00> : vector<2xf32>
    %14 = vector.multi_reduction <add>, %13, %cst_6 [1] : vector<2x8xf32> to vector<2xf32>
    %15 = vector.shape_cast %14 : vector<2xf32> to vector<2x1xf32>
    %16 = vector.broadcast %15 : vector<2x1xf32> to vector<2x8xf32>
    %17 = arith.divf %13, %16 : vector<2x8xf32>
    %18 = vector.shape_cast %17 : vector<2x8xf32> to vector<2x8x1xf32>
    %19 = vector.broadcast %18 : vector<2x8x1xf32> to vector<2x8x32xf32>
    %20 = arith.mulf %19, %0 : vector<2x8x32xf32>
    %cst_7 = arith.constant dense<0.000000e+00> : vector<2x32xf32>
    %21 = vector.multi_reduction <add>, %20, %cst_7 [1] : vector<2x8x32xf32> to vector<2x32xf32>
    %c0_8 = arith.constant 0 : index
    %c0_9 = arith.constant 0 : index
    %22 = vector.load %arg4[%c0_8, %c0_9] : memref<2x32xf32, #tpu.memory_space<vmem>>, vector<2x32xf32>
    tpu.vector_store %arg4[%c0_8, %c0_9], %21 {strides = array<i32>} : memref<2x32xf32, #tpu.memory_space<vmem>>, vector<2x32xf32>,
    return
  }
  func.func @transform_0(%arg0: i32) -> (i32, i32, i32) {
    %c0_i32 = arith.constant 0 : i32
    %c0_i32_0 = arith.constant 0 : i32
    %c0_i32_1 = arith.constant 0 : i32
    return %arg0, %c0_i32, %c0_i32_0 : i32, i32, i32
  }
  func.func @transform_1(%arg0: i32) -> (i32, i32) {
    %c0_i32 = arith.constant 0 : i32
    %c0_i32_0 = arith.constant 0 : i32
    %c0_i32_1 = arith.constant 0 : i32
    return %c0_i32, %c0_i32_0 : i32, i32
  }
  func.func @transform_2(%arg0: i32) -> i32 {
    %c0_i32 = arith.constant 0 : i32
    %c0_i32_0 = arith.constant 0 : i32
    return %c0_i32 : i32
  }
  func.func @transform_3(%arg0: i32) -> (i32, i32) {
    %c0_i32 = arith.constant 0 : i32
    %c0_i32_0 = arith.constant 0 : i32
    return %arg0, %c0_i32 : i32, i32
  }
}

</mosaic_0001>

<llo_original>
// kernel: tpu_custom_call.1
$region0: #{tpu_custom_call.1}
  #allocation0 [shape = 'u32[]', space=smem, size = 0x4, offset = 0x4, fixed_abs, tag = 'smem constant byte address 0x4 - core index']
  #allocation1 [shape = 'u32[144,128]{1,0:T(1,128)}', space=vmem, size = 0x12000, scoped, tag = 'internal scratch']
  #allocation2 [shape = 'f32[1]{0:T(128)S(6)}', space=smem, size = 0x200, scoped, tag = 'scoped memory for tpu_custom_call.1']
  %s0 = inlined_call_operand.hbm [shape: f32[2,8,32], index: 0, kind: input, shape index: {}]
  %s1 = inlined_call_operand.vmem [shape: f32[1,32], index: 1, kind: input, shape index: {}]
  %s2 = inlined_call_operand.<no memory space> [shape: f32[1], index: 2, kind: input, shape index: {}]
  %s3 = inlined_call_operand.hbm [shape: f32[2,32], index: 3, kind: output, shape index: {}]
  %s4 = sld [smem:[#allocation0]]
  $region26: #{tpu_custom_call.1} parent=0
    _
  %s6 = ssub.s32 1, %s4
  %s7 = scalar_select 0, %s6, %s4
  %8 = sst [smem:[#allocation2]] %s2
  $region1: #{tpu_custom_call.1} parent=0
    #allocation3 [shape = 'u8[8192]{0}', space=vmem, size = 0x2000, scoped, tag = 'input window, operand 0, single buffered']
    #allocation4 [shape = 's32[1]{0}', space=sflag, size = 0x4, scoped, tag = 'scoped memory for tpu_custom_call.1']
    #allocation5 [shape = 's32[1]{0}', space=sflag, size = 0x4, scoped, tag = 'scoped memory for tpu_custom_call.1']
    #allocation6 [shape = 'u8[1024]{0}', space=vmem, size = 0x400, scoped, tag = 'output window, operand 0, single buffered']
    %9 = vsyncpa [#allocation4], 0
    %10 = vsyncpa [#allocation5], 0
    // Predicated region
    $region2: #{tpu_custom_call.1} parent=1 // pred_check
      _
    $region3: #{tpu_custom_call.1} parent=1 // pred_check_branch
      %12 = sbr.rel (0) target = $region5
    $region4: #{tpu_custom_call.1} parent=1 // pred_region
      %s14 = ssub.s32 256, 256
      %15 = vsyncadd [#allocation4], %s14
      %s16 = sshll.u32 [#allocation3], 4
      %s17 = int_to_ptr.vmem [resolvable:$true] %s16
      %22 = dma.hbm_to_vmem [thread:$0]  %s0, 256, %s17, [#allocation4], 128, 128, 8
    $region5: #{tpu_custom_call.1} parent=1 // pred_fallthru
      _
    // Predicated region
    $region6: #{tpu_custom_call.1} parent=1 // pred_check
      _
    $region7: #{tpu_custom_call.1} parent=1 // pred_check_branch
      %24 = sbr.rel (0) target = $region9
    $region8: #{tpu_custom_call.1} parent=1 // pred_region
      _
    $region9: #{tpu_custom_call.1} parent=1 // pred_fallthru
      _
    // Predicated region
    $region10: #{tpu_custom_call.1} parent=1 // pred_check
      _
    $region11: #{tpu_custom_call.1} parent=1 // pred_check_branch
      %26 = sbr.rel (0) target = $region13
    $region12: #{tpu_custom_call.1} parent=1 // pred_region
      _
    $region13: #{tpu_custom_call.1} parent=1 // pred_fallthru
      _
    // Predicated region
    $region14: #{tpu_custom_call.1} parent=1 // pred_check
      _
    $region15: #{tpu_custom_call.1} parent=1 // pred_check_branch
      %28 = sbr.rel (0) target = $region17
    $region16: #{tpu_custom_call.1} parent=1 // pred_region
      %29 = dma.done [#allocation4], 256
    $region17: #{tpu_custom_call.1} parent=1 // pred_fallthru
      _
    %v30 = vld [vmem:[#allocation3] sm:$0xff]
    %v31 = vld [vmem:[#allocation3 + $0x8] sm:$0xff]
    %v32 = vld [vmem:[%s1] sm:$0x1]
    %s33 = sld [smem:[#allocation2]]
    %v35 = vlaneseq
    %v36 = vshrl.u32 %v35, 7
    %v37 = vsub.s32 0, %v36
    %v38 = vrot.slane %v32, %v37
    %v40 = vmul.f32 %v30, %v38
    %v41 = vmul.f32 %v31, %v38
    %vm42 = vcmask 261120
    %v43 = vsel %vm42, %v40, 0.0
    %44 = vadd.xlane.f32.xlu0 %v43
    %v45 = vpop.xlane.xlu0 %44
    %v46 = vsel %vm42, %v41, 0.0
    %47 = vadd.xlane.f32.xlu0 %v46
    %v48 = vpop.xlane.xlu0 %47
    %v49 = vstv %s33
    %v50 = vadd.f32 %v45, %v49
    %v51 = vadd.f32 %v48, %v49
    %v54 = vlaneseq
    %v55 = vand.u32 %v54, 127
    %v56 = vlaneseq
    %v57 = vshrl.u32 %v56, 7
    %v58 = vsub.s32 %v55, %v57
    %v59 = vrot.slane %v50, %v58
    %v60 = vlaneseq
    %v61 = vshrl.u32 %v60, 7
    %v62 = vsub.s32 %v55, %v61
    %v63 = vrot.slane %v51, %v62
    %vm64 = vcmask 1041409
    %v65 = vsel %vm64, %v63, %v59
    %vm67 = vcmask 58368
    %v68 = vsel %vm67, %v65, -inf
    %69 = vmax.xlane.f32.xlu0 %v68
    %v70 = vpop.xlane.xlu0 %69
    %v72 = vlaneseq
    %v73 = vshrl.u32 %v72, 7
    %v74 = vsub.s32 0, %v73
    %v75 = vrot.slane %v70, %v74
    %v76 = vlaneseq
    %v77 = vshrl.u32 %v76, 7
    %v78 = vsub.s32 1, %v77
    %v79 = vrot.slane %v70, %v78
    %v82 = vsub.f32 %v50, %v75
    %v83 = vsub.f32 %v51, %v79
    %v84 = vmul.f32 %v82, 1.442695
    %v85 = vpow.pop %v84
    %v86 = vmul.f32 %v83, 1.442695
    %v87 = vpow.pop %v86
    %90 = vset.pattern.permute.xlu0 0
    %91 = vperm.xlu0 %90, %v85
    %v92 = vpop.permute.xlu0 %91
    %93 = vset.pattern.permute.xlu0 0
    %94 = vperm.xlu0 %93, %v87
    %v95 = vpop.permute.xlu0 %94
    %v96 = vlaneseq
    %v97 = vshrl.u32 %v96, 7
    %v98 = vsub.s32 %v55, %v97
    %v99 = vrot.slane %v92, %v98
    %v100 = vlaneseq
    %v101 = vshrl.u32 %v100, 7
    %v102 = vsub.s32 %v55, %v101
    %v103 = vrot.slane %v95, %v102
    %v104 = vsel %vm64, %v103, %v99
    %v106 = vsel %vm67, %v104, 0.0
    %107 = vadd.xlane.f32.xlu0 %v106
    %v108 = vpop.xlane.xlu0 %107
    %v110 = vlaneseq
    %v111 = vshrl.u32 %v110, 7
    %v112 = vsub.s32 0, %v111
    %v113 = vrot.slane %v108, %v112
    %v114 = vlaneseq
    %v115 = vshrl.u32 %v114, 7
    %v116 = vsub.s32 1, %v115
    %v117 = vrot.slane %v108, %v116
    %v120 = vrcp.pop %v113
    %v121 = vmul.f32 %v85, %v120
    %v122 = vrcp.pop %v117
    %v123 = vmul.f32 %v87, %v122
    %125 = vset.pattern.permute.xlu0 0
    %126 = vperm.xlu0 %125, %v121
    %v127 = vpop.permute.xlu0 %126
    %130 = vset.pattern.permute.xlu0 0
    %131 = vperm.xlu0 %130, %v123
    %v132 = vpop.permute.xlu0 %131
    %v134 = vmul.f32 %v127, %v30
    %v135 = vmul.f32 %v132, %v31
    %v136 = vsel %vm42, %v134, 0.0
    %v137 = vrot.slane %v136, 4
    %v138 = vadd.f32 %v136, %v137
    %v139 = vrot.slane %v138, 2
    %v140 = vadd.f32 %v138, %v139
    %v141 = vrot.slane %v140, 1
    %v142 = vadd.f32 %v140, %v141
    %v143 = vsel %vm42, %v135, 0.0
    %v144 = vrot.slane %v143, 4
    %v145 = vadd.f32 %v143, %v144
    %v146 = vrot.slane %v145, 2
    %v147 = vadd.f32 %v145, %v146
    %v148 = vrot.slane %v147, 1
    %v149 = vadd.f32 %v147, %v148
    %v152 = vsel %vm64, %v149, %v142
    %vm154 = vcmask 254976
    %155 = vst.msk [vmem:[#allocation6] sm:$0x3] %vm154, %v152
    // Predicated region
    $region18: #{tpu_custom_call.1} parent=1 // pred_check
      _
    $region19: #{tpu_custom_call.1} parent=1 // pred_check_branch
      %157 = sbr.rel (0) target = $region21
    $region20: #{tpu_custom_call.1} parent=1 // pred_region
      %s159 = ssub.s32 32, 32
      %160 = vsyncadd [#allocation5], %s159
      %s162 = sshll.u32 [#allocation6], 4
      %s163 = int_to_ptr.vmem [resolvable:$true] %s162
      %165 = dma.vmem_to_hbm [thread:$0]  %s163, 32, %s3, [#allocation5]
    $region21: #{tpu_custom_call.1} parent=1 // pred_fallthru
      _
    // Predicated region
    $region22: #{tpu_custom_call.1} parent=1 // pred_check
      _
    $region23: #{tpu_custom_call.1} parent=1 // pred_check_branch
      %167 = sbr.rel (0) target = $region25
    $region24: #{tpu_custom_call.1} parent=1 // pred_region
      %168 = dma.done [#allocation5], 32
    $region25: #{tpu_custom_call.1} parent=1 // pred_fallthru
      _
    %169 = vsyncpa [#allocation4], 1
    %170 = vsyncpa [#allocation5], 1

</llo_original>
